<compile_context>
chip_gen: v5e
topology: v5e:2x2
jax: 0.10.0
libtpu: 0.0.40
codegen_flags: <defaults>
</compile_context>

<pallas_src>
import functools

import jax
import jax.numpy as jnp
from jax.experimental import pallas as pl
from jax.experimental.pallas import tpu as pltpu

CATEGORIES = ['World', 'Sports', 'Business', 'Sci/Tech']
NUM_CLASSES = len(CATEGORIES)  # 4
LANES = 128


def _round_up(x, m):
    return ((x + m - 1) // m) * m


def mlp_kernel(x_ref, w1_ref, b1_ref, w2_ref, b2_ref, o_ref):
    # Cast the f32 activation tile to bf16 in-kernel (no wrapper-side HBM pass).
    x = x_ref[...].astype(jnp.bfloat16)
    # First linear: bf16 x bf16 on the MXU with f32 accumulation.
    h = jnp.dot(x, w1_ref[...], preferred_element_type=jnp.float32)
    # Bias add + ReLU in f32 on the VPU.
    h = jnp.maximum(h + b1_ref[...], 0.0)                       # (bm, H) + (1, H)
    # Dropout(p=0.5): eval-mode identity.
    # TODO(synk): training-mode dropout would use pltpu.prng_seed + stateful_bernoulli.
    out = jnp.dot(h.astype(jnp.bfloat16), w2_ref[...],
                  preferred_element_type=jnp.float32)
    o_ref[...] = (out + b2_ref[...]).astype(o_ref.dtype)        # bf16 store, lane-dense


def prepare_params(w1, b1, w2, b2):
    """One-time parameter prep (run ONCE, not per forward call).

    Casts weights to bf16, biases to f32 row vectors, and pads the class dim to
    exactly 128 lanes (MXU/lane floor -- never pad beyond 128).
    """
    b1 = jnp.asarray(b1).reshape(1, -1)
    b2 = jnp.asarray(b2).reshape(1, -1)
    c = w2.shape[1]
    c_pad = _round_up(max(c, LANES), LANES)
    if c_pad != c:
        w2 = jnp.pad(w2, ((0, 0), (0, c_pad - c)))
        b2 = jnp.pad(b2, ((0, 0), (0, c_pad - c)))
    return (w1.astype(jnp.bfloat16), b1.astype(jnp.float32),
            w2.astype(jnp.bfloat16), b2.astype(jnp.float32))


@functools.partial(jax.jit, static_argnames=("num_classes", "bm"))
def mlp_classifier_forward(x, w1_bf, b1_f32, w2_bf, b2_f32, *,
                           num_classes=NUM_CLASSES, bm=512):
    """x:(B,D) f32, w1_bf:(D,H) bf16, b1:(1,H) f32, w2_bf:(H,Cp) bf16, b2:(1,Cp) f32
    -> logits (B, num_classes) f32."""
    B, D = x.shape
    H = w1_bf.shape[1]
    C_pad = w2_bf.shape[1]

    # ---- Batch tiling: fat tiles (>=512 where B allows), never wider than B. ----
    bm = max(16, _round_up(min(bm, _round_up(B, 16)), 16))  # x16: bf16 sublane packing
    steps = -(-B // bm)
    if steps > 1 and steps % 2 == 1:
        # v7x: even step count so both TensorCores get equal shares of the
        # "parallel" batch axis.
        steps += 1
        bm = _round_up(-(-B // steps), 16)
    B_pad = steps * bm
    # Pad only when B isn't a tile multiple (padded rows are dropped by the slice).
    x_in = x if B_pad == B else jnp.pad(x, ((0, B_pad - B), (0, 0)))

    # ---- Explicit VMEM budget (defaults: v5e 16 MiB / v6e,v7x 32 MiB scoped). ----
    vmem_needed = (2 * bm * D * 4            # x tile, f32, double-buffered
                   + 2 * bm * C_pad * 2      # out tile, bf16, double-buffered
                   + D * H * 2 + H * 4       # resident W1 (bf16) + b1 (f32)
                   + H * C_pad * 2 + C_pad * 4
                   + bm * H * 4)             # hidden activation temp (f32)
    vmem_limit = int(min(max(vmem_needed + (4 << 20), 16 << 20), 56 << 20))
    # TODO(synk): if D*H*2 grows past ~24-28 MiB (v7x 64 MiB VMEM headroom), switch
    # to a K-tiled grid with an f32 VMEM accumulator instead of a fully resident W1.

    cost = pl.CostEstimate(
        flops=2 * B_pad * D * H + 2 * B_pad * H * C_pad,
        transcendentals=0,
        bytes_accessed=(B_pad * D * 4 + D * H * 2 + H * 4
                        + H * C_pad * 2 + C_pad * 4 + B_pad * C_pad * 2),
    )

    resident = pl.Buffered(1)  # constant index_map -> fetched once, single buffer
    out = pl.pallas_call(
        mlp_kernel,
        out_shape=jax.ShapeDtypeStruct((B_pad, C_pad), jnp.bfloat16),
        grid_spec=pltpu.PrefetchScalarGridSpec(
            num_scalar_prefetch=0,
            grid=(steps,),
            in_specs=[
                pl.BlockSpec((bm, D), lambda i: (i, 0)),                             # x tile (f32)
                pl.BlockSpec((D, H), lambda i: (0, 0), pipeline_mode=resident),      # W1
                pl.BlockSpec((1, H), lambda i: (0, 0), pipeline_mode=resident),      # b1
                pl.BlockSpec((H, C_pad), lambda i: (0, 0), pipeline_mode=resident),  # W2
                pl.BlockSpec((1, C_pad), lambda i: (0, 0), pipeline_mode=resident),  # b2
            ],
            out_specs=pl.BlockSpec((bm, C_pad), lambda i: (i, 0)),
        ),
        compiler_params=pltpu.CompilerParams(
            dimension_semantics=("parallel",),
            vmem_limit_bytes=vmem_limit),
        cost_estimate=cost,
    )(x_in, w1_bf, b1_f32, w2_bf, b2_f32)

    # Strip batch/class padding and upcast for callers expecting f32 logits.
    # (Callers that can consume the padded bf16 (B_pad, 128) slab directly avoid
    #  this extra pass entirely.)
    return out[:B, :num_classes].astype(jnp.float32)


if __name__ == "__main__":
    # Small shapes consistent with the module: input_dim=256, hidden_dim=512
    # (module default), num_classes=4, batch=8.
    # NOTE: at this toy size the kernel is pure launch/DMA latency (~0.3 MFLOP);
    # tile-size behaviour should be judged at production batch sizes.
    B, D, H, C = 8, 256, 512, NUM_CLASSES

    key = jax.random.PRNGKey(0)
    kx, k1, kb1, k2, kb2 = jax.random.split(key, 5)

    x = jax.random.normal(kx, (B, D), dtype=jnp.float32)
    # Deterministic parameter init (uniform, PyTorch-Linear-like scale).
    lim1 = 1.0 / jnp.sqrt(D)
    lim2 = 1.0 / jnp.sqrt(H)
    w1 = jax.random.uniform(k1, (D, H), jnp.float32, -lim1, lim1)
    b1 = jax.random.uniform(kb1, (H,), jnp.float32, -lim1, lim1)   # 1-D, PyTorch-style
    w2 = jax.random.uniform(k2, (H, C), jnp.float32, -lim2, lim2)
    b2 = jax.random.uniform(kb2, (C,), jnp.float32, -lim2, lim2)

    # One-time parameter prep (cast + pad), kept OUT of the per-call forward.
    w1_bf, b1_f32, w2_bf, b2_f32 = prepare_params(w1, b1, w2, b2)

    out = mlp_classifier_forward(x, w1_bf, b1_f32, w2_bf, b2_f32)
    out = jax.block_until_ready(out)

    # Reference check in plain JAX (f32). Tolerance loosened for bf16 operands
    # and the bf16 output writeback.
    ref = jnp.maximum(x @ w1 + b1[None, :], 0.0) @ w2 + b2[None, :]
    assert out.shape == (B, C)
    assert jnp.allclose(out, ref, atol=7.5e-2, rtol=7.5e-2), (
        float(jnp.max(jnp.abs(out - ref))))

    print("KERNEL_OK")
</pallas_src>

<mosaic_0001>
module attributes {stable_mosaic.version = 11 : i64} {
  func.func @mlp_kernel(%arg0: i32, %arg1: memref<16x256xf32, #tpu.memory_space<vmem>>, %arg2: memref<256x512xbf16, #tpu.memory_space<vmem>>, %arg3: memref<1x512xf32, #tpu.memory_space<vmem>>, %arg4: memref<512x128xbf16, #tpu.memory_space<vmem>>, %arg5: memref<1x128xf32, #tpu.memory_space<vmem>>, %arg6: memref<16x128xbf16, #tpu.memory_space<vmem>>) attributes {dimension_semantics = [#tpu.dimension_semantics<parallel>], iteration_bounds = array<i64: 1>, scalar_prefetch = 0 : i64, scratch_operands = 0 : i64, tpu.core_type = #tpu.core_type<tc>, window_params = [{transform_indices = @transform_0, window_bounds = array<i64: 16, 256>}, {pipeline_mode = #tpu.pipeline_mode<synchronous>, transform_indices = @transform_1, window_bounds = array<i64: 256, 512>}, {pipeline_mode = #tpu.pipeline_mode<synchronous>, transform_indices = @transform_2, window_bounds = array<i64: 1, 512>}, {pipeline_mode = #tpu.pipeline_mode<synchronous>, transform_indices = @transform_3, window_bounds = array<i64: 512, 128>}, {pipeline_mode = #tpu.pipeline_mode<synchronous>, transform_indices = @transform_4, window_bounds = array<i64: 1, 128>}, {transform_indices = @transform_5, window_bounds = array<i64: 16, 128>}]} {
    %c0 = arith.constant 0 : index
    %c0_0 = arith.constant 0 : index
    %0 = vector.load %arg1[%c0, %c0_0] : memref<16x256xf32, #tpu.memory_space<vmem>>, vector<16x256xf32>
    %1 = arith.truncf %0 : vector<16x256xf32> to vector<16x256xbf16>
    %c0_1 = arith.constant 0 : index
    %c0_2 = arith.constant 0 : index
    %2 = vector.load %arg2[%c0_1, %c0_2] : memref<256x512xbf16, #tpu.memory_space<vmem>>, vector<256x512xbf16>
    %cst = arith.constant dense<0.000000e+00> : vector<16x512xf32>
    %3 = tpu.matmul %1, %2, %cst {dimension_numbers = #tpu.dot_dimension_numbers<[1], [0], [0], [1], [0, 0, 1, 1], [], []>} : vector<16x256xbf16>, vector<256x512xbf16>, vector<16x512xf32> -> vector<16x512xf32>
    %c0_3 = arith.constant 0 : index
    %c0_4 = arith.constant 0 : index
    %4 = vector.load %arg3[%c0_3, %c0_4] : memref<1x512xf32, #tpu.memory_space<vmem>>, vector<1x512xf32>
    %5 = vector.broadcast %4 : vector<1x512xf32> to vector<16x512xf32>
    %6 = arith.addf %3, %5 : vector<16x512xf32>
    %cst_5 = arith.constant 0.000000e+00 : f32
    %7 = vector.broadcast %cst_5 : f32 to vector<16x512xf32>
    %8 = arith.maximumf %6, %7 : vector<16x512xf32>
    %9 = arith.truncf %8 : vector<16x512xf32> to vector<16x512xbf16>
    %c0_6 = arith.constant 0 : index
    %c0_7 = arith.constant 0 : index
    %10 = vector.load %arg4[%c0_6, %c0_7] : memref<512x128xbf16, #tpu.memory_space<vmem>>, vector<512x128xbf16>
    %cst_8 = arith.constant dense<0.000000e+00> : vector<16x128xf32>
    %11 = tpu.matmul %9, %10, %cst_8 {dimension_numbers = #tpu.dot_dimension_numbers<[1], [0], [0], [1], [0, 0, 1, 1], [], []>} : vector<16x512xbf16>, vector<512x128xbf16>, vector<16x128xf32> -> vector<16x128xf32>
    %c0_9 = arith.constant 0 : index
    %c0_10 = arith.constant 0 : index
    %12 = vector.load %arg5[%c0_9, %c0_10] : memref<1x128xf32, #tpu.memory_space<vmem>>, vector<1x128xf32>
    %13 = vector.broadcast %12 : vector<1x128xf32> to vector<16x128xf32>
    %14 = arith.addf %11, %13 : vector<16x128xf32>
    %15 = arith.truncf %14 : vector<16x128xf32> to vector<16x128xbf16>
    %c0_11 = arith.constant 0 : index
    %c0_12 = arith.constant 0 : index
    %16 = vector.load %arg6[%c0_11, %c0_12] : memref<16x128xbf16, #tpu.memory_space<vmem>>, vector<16x128xbf16>
    tpu.vector_store %arg6[%c0_11, %c0_12], %15 {strides = array<i32>} : memref<16x128xbf16, #tpu.memory_space<vmem>>, vector<16x128xbf16>,
    return
  }
  func.func @transform_0(%arg0: i32) -> (i32, i32) {
    %c0_i32 = arith.constant 0 : i32
    %c0_i32_0 = arith.constant 0 : i32
    return %arg0, %c0_i32 : i32, i32
  }
  func.func @transform_1(%arg0: i32) -> (i32, i32) {
    %c0_i32 = arith.constant 0 : i32
    %c0_i32_0 = arith.constant 0 : i32
    %c0_i32_1 = arith.constant 0 : i32
    return %c0_i32, %c0_i32_0 : i32, i32
  }
  func.func @transform_2(%arg0: i32) -> (i32, i32) {
    %c0_i32 = arith.constant 0 : i32
    %c0_i32_0 = arith.constant 0 : i32
    %c0_i32_1 = arith.constant 0 : i32
    return %c0_i32, %c0_i32_0 : i32, i32
  }
  func.func @transform_3(%arg0: i32) -> (i32, i32) {
    %c0_i32 = arith.constant 0 : i32
    %c0_i32_0 = arith.constant 0 : i32
    %c0_i32_1 = arith.constant 0 : i32
    return %c0_i32, %c0_i32_0 : i32, i32
  }
  func.func @transform_4(%arg0: i32) -> (i32, i32) {
    %c0_i32 = arith.constant 0 : i32
    %c0_i32_0 = arith.constant 0 : i32
    %c0_i32_1 = arith.constant 0 : i32
    return %c0_i32, %c0_i32_0 : i32, i32
  }
  func.func @transform_5(%arg0: i32) -> (i32, i32) {
    %c0_i32 = arith.constant 0 : i32
    %c0_i32_0 = arith.constant 0 : i32
    return %arg0, %c0_i32 : i32, i32
  }
}

</mosaic_0001>

<llo_original>
// kernel: mlp_classifier_forward.1
$region0: #{mlp_classifier_forward.1}
  #allocation0 [shape = 'u32[]', space=smem, size = 0x4, offset = 0x4, fixed_abs, tag = 'smem constant byte address 0x4 - core index']
  #allocation1 [shape = 'u32[72,128]{1,0:T(1,128)}', space=vmem, size = 0x9000, scoped, tag = 'internal scratch']
  %s0 = inlined_call_operand.vmem [shape: f32[16,256], index: 0, kind: input, shape index: {}]
  %s1 = inlined_call_operand.hbm [shape: bf16[256,512], index: 1, kind: input, shape index: {}]
  %s2 = inlined_call_operand.vmem [shape: f32[1,512], index: 2, kind: input, shape index: {}]
  %s3 = inlined_call_operand.hbm [shape: bf16[512,128], index: 3, kind: input, shape index: {}]
  %s4 = inlined_call_operand.vmem [shape: f32[1,128], index: 4, kind: input, shape index: {}]
  %s5 = inlined_call_operand.vmem [shape: bf16[16,128], index: 5, kind: output, shape index: {}]
  %s6 = sld [smem:[#allocation0]]
  $region38: #{mlp_classifier_forward.1} parent=0
    _
  %s8 = ssub.s32 1, %s6
  %s9 = scalar_select 0, %s8, %s6
  $region1: #{mlp_classifier_forward.1} parent=0
    #allocation2 [shape = 'u8[262144]{0}', space=vmem, size = 0x40000, scoped, tag = 'input window, operand 1, single buffered']
    #allocation3 [shape = 's32[1]{0}', space=sflag, size = 0x4, scoped, tag = 'scoped memory for mlp_classifier_forward.1']
    #allocation4 [shape = 'u8[131072]{0}', space=vmem, size = 0x20000, scoped, tag = 'input window, operand 3, single buffered']
    #allocation5 [shape = 's32[1]{0}', space=sflag, size = 0x4, scoped, tag = 'scoped memory for mlp_classifier_forward.1']
    %10 = vsyncpa [#allocation3], 0
    %11 = vsyncpa [#allocation5], 0
    // Predicated region
    $region2: #{mlp_classifier_forward.1} parent=1 // pred_check
      _
    $region3: #{mlp_classifier_forward.1} parent=1 // pred_check_branch
      %13 = sbr.rel (0) target = $region5
    $region4: #{mlp_classifier_forward.1} parent=1 // pred_region
      _
    $region5: #{mlp_classifier_forward.1} parent=1 // pred_fallthru
      _
    // Predicated region
    $region6: #{mlp_classifier_forward.1} parent=1 // pred_check
      _
    $region7: #{mlp_classifier_forward.1} parent=1 // pred_check_branch
      %15 = sbr.rel (0) target = $region9
    $region8: #{mlp_classifier_forward.1} parent=1 // pred_region
      %17 = vsyncadd [#allocation3], 0
      %s18 = sshll.u32 %s1, 4
      %s19 = int_to_ptr.hbm [resolvable:$true] %s18
      %s20 = sshll.u32 [#allocation2], 4
      %s21 = int_to_ptr.vmem [resolvable:$true] %s20
      %26 = dma.hbm_to_vmem [thread:$0]  %s19, 8192, %s21, [#allocation3], 256, 256, 16
    $region9: #{mlp_classifier_forward.1} parent=1 // pred_fallthru
      _
    // Predicated region
    $region10: #{mlp_classifier_forward.1} parent=1 // pred_check
      _
    $region11: #{mlp_classifier_forward.1} parent=1 // pred_check_branch
      %28 = sbr.rel (0) target = $region13
    $region12: #{mlp_classifier_forward.1} parent=1 // pred_region
      _
    $region13: #{mlp_classifier_forward.1} parent=1 // pred_fallthru
      _
    // Predicated region
    $region14: #{mlp_classifier_forward.1} parent=1 // pred_check
      _
    $region15: #{mlp_classifier_forward.1} parent=1 // pred_check_branch
      %30 = sbr.rel (0) target = $region17
    $region16: #{mlp_classifier_forward.1} parent=1 // pred_region
      %32 = vsyncadd [#allocation5], 0
      %s33 = sshll.u32 %s3, 4
      %s34 = int_to_ptr.hbm [resolvable:$true] %s33
      %s35 = sshll.u32 [#allocation4], 4
      %s36 = int_to_ptr.vmem [resolvable:$true] %s35
      %41 = dma.hbm_to_vmem [thread:$0]  %s34, 4096, %s36, [#allocation5], 64, 64, 4
    $region17: #{mlp_classifier_forward.1} parent=1 // pred_fallthru
      _
    // Predicated region
    $region18: #{mlp_classifier_forward.1} parent=1 // pred_check
      _
    $region19: #{mlp_classifier_forward.1} parent=1 // pred_check_branch
      %43 = sbr.rel (0) target = $region21
    $region20: #{mlp_classifier_forward.1} parent=1 // pred_region
      _
    $region21: #{mlp_classifier_forward.1} parent=1 // pred_fallthru
      _
    // Predicated region
    $region22: #{mlp_classifier_forward.1} parent=1 // pred_check
      _
    $region23: #{mlp_classifier_forward.1} parent=1 // pred_check_branch
      %45 = sbr.rel (0) target = $region25
    $region24: #{mlp_classifier_forward.1} parent=1 // pred_region
      %47 = dma.done [#allocation3], 8192
    $region25: #{mlp_classifier_forward.1} parent=1 // pred_fallthru
      _
    // Predicated region
    $region26: #{mlp_classifier_forward.1} parent=1 // pred_check
      _
    $region27: #{mlp_classifier_forward.1} parent=1 // pred_check_branch
      %49 = sbr.rel (0) target = $region29
    $region28: #{mlp_classifier_forward.1} parent=1 // pred_region
      %51 = dma.done [#allocation5], 4096
    $region29: #{mlp_classifier_forward.1} parent=1 // pred_fallthru
      _
    %v52 = vld [vmem:[%s0] sm:$0xff]
    %v53 = vld [vmem:[%s0 + $0x8] sm:$0xff]
    %v54 = vld [vmem:[%s0 + $0x10] sm:$0xff]
    %v55 = vld [vmem:[%s0 + $0x18] sm:$0xff]
    %v56 = vpack.c.bf16 %v54, %v52
    %v57 = vpack.c.bf16 %v55, %v53
    %v58 = vld [vmem:[#allocation2] sm:$0xff]
    %v59 = vld [vmem:[#allocation2 + $0x8] sm:$0xff]
    %v60 = vld [vmem:[#allocation2 + $0x10] sm:$0xff]
    %v61 = vld [vmem:[#allocation2 + $0x18] sm:$0xff]
    %v62 = vld [vmem:[#allocation2 + $0x20] sm:$0xff]
    %v63 = vld [vmem:[#allocation2 + $0x28] sm:$0xff]
    %v64 = vld [vmem:[#allocation2 + $0x30] sm:$0xff]
    %v65 = vld [vmem:[#allocation2 + $0x38] sm:$0xff]
    %v66 = vld [vmem:[#allocation2 + $0x40] sm:$0xff]
    %v67 = vld [vmem:[#allocation2 + $0x48] sm:$0xff]
    %v68 = vld [vmem:[#allocation2 + $0x50] sm:$0xff]
    %v69 = vld [vmem:[#allocation2 + $0x58] sm:$0xff]
    %v70 = vld [vmem:[#allocation2 + $0x60] sm:$0xff]
    %v71 = vld [vmem:[#allocation2 + $0x68] sm:$0xff]
    %v72 = vld [vmem:[#allocation2 + $0x70] sm:$0xff]
    %v73 = vld [vmem:[#allocation2 + $0x78] sm:$0xff]
    %v74 = vld [vmem:[#allocation2 + $0x80] sm:$0xff]
    %v75 = vld [vmem:[#allocation2 + $0x88] sm:$0xff]
    %v76 = vld [vmem:[#allocation2 + $0x90] sm:$0xff]
    %v77 = vld [vmem:[#allocation2 + $0x98] sm:$0xff]
    %v78 = vld [vmem:[#allocation2 + $0xa0] sm:$0xff]
    %v79 = vld [vmem:[#allocation2 + $0xa8] sm:$0xff]
    %v80 = vld [vmem:[#allocation2 + $0xb0] sm:$0xff]
    %v81 = vld [vmem:[#allocation2 + $0xb8] sm:$0xff]
    %v82 = vld [vmem:[#allocation2 + $0xc0] sm:$0xff]
    %v83 = vld [vmem:[#allocation2 + $0xc8] sm:$0xff]
    %v84 = vld [vmem:[#allocation2 + $0xd0] sm:$0xff]
    %v85 = vld [vmem:[#allocation2 + $0xd8] sm:$0xff]
    %v86 = vld [vmem:[#allocation2 + $0xe0] sm:$0xff]
    %v87 = vld [vmem:[#allocation2 + $0xe8] sm:$0xff]
    %v88 = vld [vmem:[#allocation2 + $0xf0] sm:$0xff]
    %v89 = vld [vmem:[#allocation2 + $0xf8] sm:$0xff]
    %v90 = vld [vmem:[#allocation2 + $0x100] sm:$0xff]
    %v91 = vld [vmem:[#allocation2 + $0x108] sm:$0xff]
    %v92 = vld [vmem:[#allocation2 + $0x110] sm:$0xff]
    %v93 = vld [vmem:[#allocation2 + $0x118] sm:$0xff]
    %v94 = vld [vmem:[#allocation2 + $0x120] sm:$0xff]
    %v95 = vld [vmem:[#allocation2 + $0x128] sm:$0xff]
    %v96 = vld [vmem:[#allocation2 + $0x130] sm:$0xff]
    %v97 = vld [vmem:[#allocation2 + $0x138] sm:$0xff]
    %v98 = vld [vmem:[#allocation2 + $0x140] sm:$0xff]
    %v99 = vld [vmem:[#allocation2 + $0x148] sm:$0xff]
    %v100 = vld [vmem:[#allocation2 + $0x150] sm:$0xff]
    %v101 = vld [vmem:[#allocation2 + $0x158] sm:$0xff]
    %v102 = vld [vmem:[#allocation2 + $0x160] sm:$0xff]
    %v103 = vld [vmem:[#allocation2 + $0x168] sm:$0xff]
    %v104 = vld [vmem:[#allocation2 + $0x170] sm:$0xff]
    %v105 = vld [vmem:[#allocation2 + $0x178] sm:$0xff]
    %v106 = vld [vmem:[#allocation2 + $0x180] sm:$0xff]
    %v107 = vld [vmem:[#allocation2 + $0x188] sm:$0xff]
    %v108 = vld [vmem:[#allocation2 + $0x190] sm:$0xff]
    %v109 = vld [vmem:[#allocation2 + $0x198] sm:$0xff]
    %v110 = vld [vmem:[#allocation2 + $0x1a0] sm:$0xff]
    %v111 = vld [vmem:[#allocation2 + $0x1a8] sm:$0xff]
    %v112 = vld [vmem:[#allocation2 + $0x1b0] sm:$0xff]
    %v113 = vld [vmem:[#allocation2 + $0x1b8] sm:$0xff]
    %v114 = vld [vmem:[#allocation2 + $0x1c0] sm:$0xff]
    %v115 = vld [vmem:[#allocation2 + $0x1c8] sm:$0xff]
    %v116 = vld [vmem:[#allocation2 + $0x1d0] sm:$0xff]
    %v117 = vld [vmem:[#allocation2 + $0x1d8] sm:$0xff]
    %v118 = vld [vmem:[#allocation2 + $0x1e0] sm:$0xff]
    %v119 = vld [vmem:[#allocation2 + $0x1e8] sm:$0xff]
    %v120 = vld [vmem:[#allocation2 + $0x1f0] sm:$0xff]
    %v121 = vld [vmem:[#allocation2 + $0x1f8] sm:$0xff]
    %v122 = vld [vmem:[%s2] sm:$0xf]
    %v124 = vperm.slane %v122, 0
    %v125 = vperm.slane %v122, 1
    %v126 = vperm.slane %v122, 2
    %v127 = vperm.slane %v122, 3
    %v196 = vunpack.c.l.b16 %v58
    %v197 = vunpack.c.h.b16 %v58
    %v198 = vunpack.c.l.b16 %v59
    %v199 = vunpack.c.h.b16 %v59
    %v200 = vunpack.c.l.b16 %v60
    %v201 = vunpack.c.h.b16 %v60
    %v202 = vunpack.c.l.b16 %v61
    %v203 = vunpack.c.h.b16 %v61
    %v204 = vunpack.c.l.b16 %v62
    %v205 = vunpack.c.h.b16 %v62
    %v206 = vunpack.c.l.b16 %v63
    %v207 = vunpack.c.h.b16 %v63
    %v208 = vunpack.c.l.b16 %v64
    %v209 = vunpack.c.h.b16 %v64
    %v210 = vunpack.c.l.b16 %v65
    %v211 = vunpack.c.h.b16 %v65
    %v212 = vunpack.c.l.b16 %v66
    %v213 = vunpack.c.h.b16 %v66
    %v214 = vunpack.c.l.b16 %v67
    %v215 = vunpack.c.h.b16 %v67
    %v216 = vunpack.c.l.b16 %v68
    %v217 = vunpack.c.h.b16 %v68
    %v218 = vunpack.c.l.b16 %v69
    %v219 = vunpack.c.h.b16 %v69
    %v220 = vunpack.c.l.b16 %v70
    %v221 = vunpack.c.h.b16 %v70
    %v222 = vunpack.c.l.b16 %v71
    %v223 = vunpack.c.h.b16 %v71
    %v224 = vunpack.c.l.b16 %v72
    %v225 = vunpack.c.h.b16 %v72
    %v226 = vunpack.c.l.b16 %v73
    %v227 = vunpack.c.h.b16 %v73
    %v228 = vunpack.c.l.b16 %v74
    %v229 = vunpack.c.h.b16 %v74
    %v230 = vunpack.c.l.b16 %v75
    %v231 = vunpack.c.h.b16 %v75
    %v232 = vunpack.c.l.b16 %v76
    %v233 = vunpack.c.h.b16 %v76
    %v234 = vunpack.c.l.b16 %v77
    %v235 = vunpack.c.h.b16 %v77
    %v236 = vunpack.c.l.b16 %v78
    %v237 = vunpack.c.h.b16 %v78
    %v238 = vunpack.c.l.b16 %v79
    %v239 = vunpack.c.h.b16 %v79
    %v240 = vunpack.c.l.b16 %v80
    %v241 = vunpack.c.h.b16 %v80
    %v242 = vunpack.c.l.b16 %v81
    %v243 = vunpack.c.h.b16 %v81
    %v244 = vunpack.c.l.b16 %v82
    %v245 = vunpack.c.h.b16 %v82
    %v246 = vunpack.c.l.b16 %v83
    %v247 = vunpack.c.h.b16 %v83
    %v248 = vunpack.c.l.b16 %v84
    %v249 = vunpack.c.h.b16 %v84
    %v250 = vunpack.c.l.b16 %v85
    %v251 = vunpack.c.h.b16 %v85
    %v252 = vunpack.c.l.b16 %v86
    %v253 = vunpack.c.h.b16 %v86
    %v254 = vunpack.c.l.b16 %v87
    %v255 = vunpack.c.h.b16 %v87
    %v256 = vunpack.c.l.b16 %v88
    %v257 = vunpack.c.h.b16 %v88
    %v258 = vunpack.c.l.b16 %v89
    %v259 = vunpack.c.h.b16 %v89
    %v260 = vunpack.c.l.b16 %v90
    %v261 = vunpack.c.h.b16 %v90
    %v262 = vunpack.c.l.b16 %v91
    %v263 = vunpack.c.h.b16 %v91
    %v264 = vunpack.c.l.b16 %v92
    %v265 = vunpack.c.h.b16 %v92
    %v266 = vunpack.c.l.b16 %v93
    %v267 = vunpack.c.h.b16 %v93
    %v268 = vunpack.c.l.b16 %v94
    %v269 = vunpack.c.h.b16 %v94
    %v270 = vunpack.c.l.b16 %v95
    %v271 = vunpack.c.h.b16 %v95
    %v272 = vunpack.c.l.b16 %v96
    %v273 = vunpack.c.h.b16 %v96
    %v274 = vunpack.c.l.b16 %v97
    %v275 = vunpack.c.h.b16 %v97
    %v276 = vunpack.c.l.b16 %v98
    %v277 = vunpack.c.h.b16 %v98
    %v278 = vunpack.c.l.b16 %v99
    %v279 = vunpack.c.h.b16 %v99
    %v280 = vunpack.c.l.b16 %v100
    %v281 = vunpack.c.h.b16 %v100
    %v282 = vunpack.c.l.b16 %v101
    %v283 = vunpack.c.h.b16 %v101
    %v284 = vunpack.c.l.b16 %v102
    %v285 = vunpack.c.h.b16 %v102
    %v286 = vunpack.c.l.b16 %v103
    %v287 = vunpack.c.h.b16 %v103
    %v288 = vunpack.c.l.b16 %v104
    %v289 = vunpack.c.h.b16 %v104
    %v290 = vunpack.c.l.b16 %v105
    %v291 = vunpack.c.h.b16 %v105
    %v292 = vunpack.c.l.b16 %v106
    %v293 = vunpack.c.h.b16 %v106
    %v294 = vunpack.c.l.b16 %v107
    %v295 = vunpack.c.h.b16 %v107
    %v296 = vunpack.c.l.b16 %v108
    %v297 = vunpack.c.h.b16 %v108
    %v298 = vunpack.c.l.b16 %v109
    %v299 = vunpack.c.h.b16 %v109
    %v300 = vunpack.c.l.b16 %v110
    %v301 = vunpack.c.h.b16 %v110
    %v302 = vunpack.c.l.b16 %v111
    %v303 = vunpack.c.h.b16 %v111
    %v304 = vunpack.c.l.b16 %v112
    %v305 = vunpack.c.h.b16 %v112
    %v306 = vunpack.c.l.b16 %v113
    %v307 = vunpack.c.h.b16 %v113
    %v308 = vunpack.c.l.b16 %v114
    %v309 = vunpack.c.h.b16 %v114
    %v310 = vunpack.c.l.b16 %v115
    %v311 = vunpack.c.h.b16 %v115
    %v312 = vunpack.c.l.b16 %v116
    %v313 = vunpack.c.h.b16 %v116
    %v314 = vunpack.c.l.b16 %v117
    %v315 = vunpack.c.h.b16 %v117
    %v316 = vunpack.c.l.b16 %v118
    %v317 = vunpack.c.h.b16 %v118
    %v318 = vunpack.c.l.b16 %v119
    %v319 = vunpack.c.h.b16 %v119
    %v320 = vunpack.c.l.b16 %v120
    %v321 = vunpack.c.h.b16 %v120
    %v322 = vunpack.c.l.b16 %v121
    %v323 = vunpack.c.h.b16 %v121
    %v324 = vpack.c.b16 %v200, %v196
    %v325 = vpack.c.b16 %v201, %v197
    %v326 = vpack.c.b16 %v202, %v198
    %v327 = vpack.c.b16 %v203, %v199
    %v328 = vpack.c.b16 %v208, %v204
    %v329 = vpack.c.b16 %v209, %v205
    %v330 = vpack.c.b16 %v210, %v206
    %v331 = vpack.c.b16 %v211, %v207
    %v332 = vpack.c.b16 %v216, %v212
    %v333 = vpack.c.b16 %v217, %v213
    %v334 = vpack.c.b16 %v218, %v214
    %v335 = vpack.c.b16 %v219, %v215
    %v336 = vpack.c.b16 %v224, %v220
    %v337 = vpack.c.b16 %v225, %v221
    %v338 = vpack.c.b16 %v226, %v222
    %v339 = vpack.c.b16 %v227, %v223
    %v340 = vpack.c.b16 %v232, %v228
    %v341 = vpack.c.b16 %v233, %v229
    %v342 = vpack.c.b16 %v234, %v230
    %v343 = vpack.c.b16 %v235, %v231
    %v344 = vpack.c.b16 %v240, %v236
    %v345 = vpack.c.b16 %v241, %v237
    %v346 = vpack.c.b16 %v242, %v238
    %v347 = vpack.c.b16 %v243, %v239
    %v348 = vpack.c.b16 %v248, %v244
    %v349 = vpack.c.b16 %v249, %v245
    %v350 = vpack.c.b16 %v250, %v246
    %v351 = vpack.c.b16 %v251, %v247
    %v352 = vpack.c.b16 %v256, %v252
    %v353 = vpack.c.b16 %v257, %v253
    %v354 = vpack.c.b16 %v258, %v254
    %v355 = vpack.c.b16 %v259, %v255
    %v356 = vpack.c.b16 %v264, %v260
    %v357 = vpack.c.b16 %v265, %v261
    %v358 = vpack.c.b16 %v266, %v262
    %v359 = vpack.c.b16 %v267, %v263
    %v360 = vpack.c.b16 %v272, %v268
    %v361 = vpack.c.b16 %v273, %v269
    %v362 = vpack.c.b16 %v274, %v270
    %v363 = vpack.c.b16 %v275, %v271
    %v364 = vpack.c.b16 %v280, %v276
    %v365 = vpack.c.b16 %v281, %v277
    %v366 = vpack.c.b16 %v282, %v278
    %v367 = vpack.c.b16 %v283, %v279
    %v368 = vpack.c.b16 %v288, %v284
    %v369 = vpack.c.b16 %v289, %v285
    %v370 = vpack.c.b16 %v290, %v286
    %v371 = vpack.c.b16 %v291, %v287
    %v372 = vpack.c.b16 %v296, %v292
    %v373 = vpack.c.b16 %v297, %v293
    %v374 = vpack.c.b16 %v298, %v294
    %v375 = vpack.c.b16 %v299, %v295
    %v376 = vpack.c.b16 %v304, %v300
    %v377 = vpack.c.b16 %v305, %v301
    %v378 = vpack.c.b16 %v306, %v302
    %v379 = vpack.c.b16 %v307, %v303
    %v380 = vpack.c.b16 %v312, %v308
    %v381 = vpack.c.b16 %v313, %v309
    %v382 = vpack.c.b16 %v314, %v310
    %v383 = vpack.c.b16 %v315, %v311
    %v384 = vpack.c.b16 %v320, %v316
    %v385 = vpack.c.b16 %v321, %v317
    %v386 = vpack.c.b16 %v322, %v318
    %v387 = vpack.c.b16 %v323, %v319
    %452 = vmatpush.bf16.msra.mxu0 %v352
    %453 = vmatpush.bf16.msra.mxu0 %v348
    %454 = vmatpush.bf16.msra.mxu0 %v344
    %455 = vmatpush.bf16.msra.mxu0 %v340
    %456 = vmatpush.bf16.msra.mxu0 %v336
    %457 = vmatpush.bf16.msra.mxu0 %v332
    %458 = vmatpush.bf16.msra.mxu0 %v328
    %459 = vmatpush.bf16.msra.mxu0 %v324
    %460 = vmatmul.bf16.gmra.mxu0 %v56
    %v461 = vpop.f32.mrf.mxu0
    %v462 = vadd.f32 %v124, %v461
    %v463 = vpop.f32.mrf.mxu0
    %v464 = vadd.f32 %v124, %v463
    %465 = vdwg.mxu0
    %466 = vmatpush.bf16.msra.mxu0 %v384
    %467 = vmatpush.bf16.msra.mxu0 %v380
    %468 = vmatpush.bf16.msra.mxu0 %v376
    %469 = vmatpush.bf16.msra.mxu0 %v372
    %470 = vmatpush.bf16.msra.mxu0 %v368
    %471 = vmatpush.bf16.msra.mxu0 %v364
    %472 = vmatpush.bf16.msra.mxu0 %v360
    %473 = vmatpush.bf16.msra.mxu0 %v356
    %474 = vmatmul.bf16.gmra.mxu0 %v57
    %v475 = vpop.f32.mrf.mxu0
    %v476 = vadd.f32 %v462, %v475
    %v477 = vpop.f32.mrf.mxu0
    %v478 = vadd.f32 %v464, %v477
    %479 = vdwg.mxu0
    %480 = vmatpush.bf16.msra.mxu0 %v353
    %481 = vmatpush.bf16.msra.mxu0 %v349
    %482 = vmatpush.bf16.msra.mxu0 %v345
    %483 = vmatpush.bf16.msra.mxu0 %v341
    %484 = vmatpush.bf16.msra.mxu0 %v337
    %485 = vmatpush.bf16.msra.mxu0 %v333
    %486 = vmatpush.bf16.msra.mxu0 %v329
    %487 = vmatpush.bf16.msra.mxu0 %v325
    %488 = vmatmul.bf16.gmra.mxu0 %v56
    %v489 = vpop.f32.mrf.mxu0
    %v490 = vadd.f32 %v125, %v489
    %v491 = vpop.f32.mrf.mxu0
    %v492 = vadd.f32 %v125, %v491
    %493 = vdwg.mxu0
    %494 = vmatpush.bf16.msra.mxu0 %v385
    %495 = vmatpush.bf16.msra.mxu0 %v381
    %496 = vmatpush.bf16.msra.mxu0 %v377
    %497 = vmatpush.bf16.msra.mxu0 %v373
    %498 = vmatpush.bf16.msra.mxu0 %v369
    %499 = vmatpush.bf16.msra.mxu0 %v365
    %500 = vmatpush.bf16.msra.mxu0 %v361
    %501 = vmatpush.bf16.msra.mxu0 %v357
    %502 = vmatmul.bf16.gmra.mxu0 %v57
    %v503 = vpop.f32.mrf.mxu0
    %v504 = vadd.f32 %v490, %v503
    %v505 = vpop.f32.mrf.mxu0
    %v506 = vadd.f32 %v492, %v505
    %507 = vdwg.mxu0
    %508 = vmatpush.bf16.msra.mxu0 %v354
    %509 = vmatpush.bf16.msra.mxu0 %v350
    %510 = vmatpush.bf16.msra.mxu0 %v346
    %511 = vmatpush.bf16.msra.mxu0 %v342
    %512 = vmatpush.bf16.msra.mxu0 %v338
    %513 = vmatpush.bf16.msra.mxu0 %v334
    %514 = vmatpush.bf16.msra.mxu0 %v330
    %515 = vmatpush.bf16.msra.mxu0 %v326
    %516 = vmatmul.bf16.gmra.mxu0 %v56
    %v517 = vpop.f32.mrf.mxu0
    %v518 = vadd.f32 %v126, %v517
    %v519 = vpop.f32.mrf.mxu0
    %v520 = vadd.f32 %v126, %v519
    %521 = vdwg.mxu0
    %522 = vmatpush.bf16.msra.mxu0 %v386
    %523 = vmatpush.bf16.msra.mxu0 %v382
    %524 = vmatpush.bf16.msra.mxu0 %v378
    %525 = vmatpush.bf16.msra.mxu0 %v374
    %526 = vmatpush.bf16.msra.mxu0 %v370
    %527 = vmatpush.bf16.msra.mxu0 %v366
    %528 = vmatpush.bf16.msra.mxu0 %v362
    %529 = vmatpush.bf16.msra.mxu0 %v358
    %530 = vmatmul.bf16.gmra.mxu0 %v57
    %v531 = vpop.f32.mrf.mxu0
    %v532 = vadd.f32 %v518, %v531
    %v533 = vpop.f32.mrf.mxu0
    %v534 = vadd.f32 %v520, %v533
    %535 = vdwg.mxu0
    %536 = vmatpush.bf16.msra.mxu0 %v355
    %537 = vmatpush.bf16.msra.mxu0 %v351
    %538 = vmatpush.bf16.msra.mxu0 %v347
    %539 = vmatpush.bf16.msra.mxu0 %v343
    %540 = vmatpush.bf16.msra.mxu0 %v339
    %541 = vmatpush.bf16.msra.mxu0 %v335
    %542 = vmatpush.bf16.msra.mxu0 %v331
    %543 = vmatpush.bf16.msra.mxu0 %v327
    %544 = vmatmul.bf16.gmra.mxu0 %v56
    %v545 = vpop.f32.mrf.mxu0
    %v546 = vadd.f32 %v127, %v545
    %v547 = vpop.f32.mrf.mxu0
    %v548 = vadd.f32 %v127, %v547
    %549 = vdwg.mxu0
    %550 = vmatpush.bf16.msra.mxu0 %v387
    %551 = vmatpush.bf16.msra.mxu0 %v383
    %552 = vmatpush.bf16.msra.mxu0 %v379
    %553 = vmatpush.bf16.msra.mxu0 %v375
    %554 = vmatpush.bf16.msra.mxu0 %v371
    %555 = vmatpush.bf16.msra.mxu0 %v367
    %556 = vmatpush.bf16.msra.mxu0 %v363
    %557 = vmatpush.bf16.msra.mxu0 %v359
    %558 = vmatmul.bf16.gmra.mxu0 %v57
    %v559 = vpop.f32.mrf.mxu0
    %v560 = vadd.f32 %v546, %v559
    %v561 = vpop.f32.mrf.mxu0
    %v562 = vadd.f32 %v548, %v561
    %563 = vdwg.mxu0
    %v564 = vmax.f32 %v476, 0.0
    %v565 = vmax.f32 %v504, 0.0
    %v566 = vmax.f32 %v532, 0.0
    %v567 = vmax.f32 %v560, 0.0
    %v568 = vmax.f32 %v478, 0.0
    %v569 = vmax.f32 %v506, 0.0
    %v570 = vmax.f32 %v534, 0.0
    %v571 = vmax.f32 %v562, 0.0
    %v572 = vpack.c.bf16 %v568, %v564
    %v573 = vpack.c.bf16 %v569, %v565
    %v574 = vpack.c.bf16 %v570, %v566
    %v575 = vpack.c.bf16 %v571, %v567
    %v576 = vld [vmem:[#allocation4] sm:$0xf]
    %v577 = vld [vmem:[#allocation4 + $0x4] sm:$0xf]
    %v578 = vld [vmem:[#allocation4 + $0x8] sm:$0xf]
    %v579 = vld [vmem:[#allocation4 + $0xc] sm:$0xf]
    %v580 = vld [vmem:[#allocation4 + $0x10] sm:$0xf]
    %v581 = vld [vmem:[#allocation4 + $0x14] sm:$0xf]
    %v582 = vld [vmem:[#allocation4 + $0x18] sm:$0xf]
    %v583 = vld [vmem:[#allocation4 + $0x1c] sm:$0xf]
    %v584 = vld [vmem:[#allocation4 + $0x20] sm:$0xf]
    %v585 = vld [vmem:[#allocation4 + $0x24] sm:$0xf]
    %v586 = vld [vmem:[#allocation4 + $0x28] sm:$0xf]
    %v587 = vld [vmem:[#allocation4 + $0x2c] sm:$0xf]
    %v588 = vld [vmem:[#allocation4 + $0x30] sm:$0xf]
    %v589 = vld [vmem:[#allocation4 + $0x34] sm:$0xf]
    %v590 = vld [vmem:[#allocation4 + $0x38] sm:$0xf]
    %v591 = vld [vmem:[#allocation4 + $0x3c] sm:$0xf]
    %v592 = vld [vmem:[#allocation4 + $0x40] sm:$0xf]
    %v593 = vld [vmem:[#allocation4 + $0x44] sm:$0xf]
    %v594 = vld [vmem:[#allocation4 + $0x48] sm:$0xf]
    %v595 = vld [vmem:[#allocation4 + $0x4c] sm:$0xf]
    %v596 = vld [vmem:[#allocation4 + $0x50] sm:$0xf]
    %v597 = vld [vmem:[#allocation4 + $0x54] sm:$0xf]
    %v598 = vld [vmem:[#allocation4 + $0x58] sm:$0xf]
    %v599 = vld [vmem:[#allocation4 + $0x5c] sm:$0xf]
    %v600 = vld [vmem:[#allocation4 + $0x60] sm:$0xf]
    %v601 = vld [vmem:[#allocation4 + $0x64] sm:$0xf]
    %v602 = vld [vmem:[#allocation4 + $0x68] sm:$0xf]
    %v603 = vld [vmem:[#allocation4 + $0x6c] sm:$0xf]
    %v604 = vld [vmem:[#allocation4 + $0x70] sm:$0xf]
    %v605 = vld [vmem:[#allocation4 + $0x74] sm:$0xf]
    %v606 = vld [vmem:[#allocation4 + $0x78] sm:$0xf]
    %v607 = vld [vmem:[#allocation4 + $0x7c] sm:$0xf]
    %v608 = vld [vmem:[#allocation4 + $0x80] sm:$0xf]
    %v609 = vld [vmem:[#allocation4 + $0x84] sm:$0xf]
    %v610 = vld [vmem:[#allocation4 + $0x88] sm:$0xf]
    %v611 = vld [vmem:[#allocation4 + $0x8c] sm:$0xf]
    %v612 = vld [vmem:[#allocation4 + $0x90] sm:$0xf]
    %v613 = vld [vmem:[#allocation4 + $0x94] sm:$0xf]
    %v614 = vld [vmem:[#allocation4 + $0x98] sm:$0xf]
    %v615 = vld [vmem:[#allocation4 + $0x9c] sm:$0xf]
    %v616 = vld [vmem:[#allocation4 + $0xa0] sm:$0xf]
    %v617 = vld [vmem:[#allocation4 + $0xa4] sm:$0xf]
    %v618 = vld [vmem:[#allocation4 + $0xa8] sm:$0xf]
    %v619 = vld [vmem:[#allocation4 + $0xac] sm:$0xf]
    %v620 = vld [vmem:[#allocation4 + $0xb0] sm:$0xf]
    %v621 = vld [vmem:[#allocation4 + $0xb4] sm:$0xf]
    %v622 = vld [vmem:[#allocation4 + $0xb8] sm:$0xf]
    %v623 = vld [vmem:[#allocation4 + $0xbc] sm:$0xf]
    %v624 = vld [vmem:[#allocation4 + $0xc0] sm:$0xf]
    %v625 = vld [vmem:[#allocation4 + $0xc4] sm:$0xf]
    %v626 = vld [vmem:[#allocation4 + $0xc8] sm:$0xf]
    %v627 = vld [vmem:[#allocation4 + $0xcc] sm:$0xf]
    %v628 = vld [vmem:[#allocation4 + $0xd0] sm:$0xf]
    %v629 = vld [vmem:[#allocation4 + $0xd4] sm:$0xf]
    %v630 = vld [vmem:[#allocation4 + $0xd8] sm:$0xf]
    %v631 = vld [vmem:[#allocation4 + $0xdc] sm:$0xf]
    %v632 = vld [vmem:[#allocation4 + $0xe0] sm:$0xf]
    %v633 = vld [vmem:[#allocation4 + $0xe4] sm:$0xf]
    %v634 = vld [vmem:[#allocation4 + $0xe8] sm:$0xf]
    %v635 = vld [vmem:[#allocation4 + $0xec] sm:$0xf]
    %v636 = vld [vmem:[#allocation4 + $0xf0] sm:$0xf]
    %v637 = vld [vmem:[#allocation4 + $0xf4] sm:$0xf]
    %v638 = vld [vmem:[#allocation4 + $0xf8] sm:$0xf]
    %v639 = vld [vmem:[#allocation4 + $0xfc] sm:$0xf]
    %v640 = vld [vmem:[%s4] sm:$0x1]
    %v642 = vperm.slane %v640, 0
    %v708 = vunpack.c.l.b16 %v576
    %v709 = vunpack.c.l.b16 %v577
    %v710 = vunpack.c.l.b16 %v578
    %v711 = vunpack.c.l.b16 %v579
    %v712 = vunpack.c.l.b16 %v580
    %v713 = vunpack.c.l.b16 %v581
    %v714 = vunpack.c.l.b16 %v582
    %v715 = vunpack.c.l.b16 %v583
    %v716 = vunpack.c.l.b16 %v584
    %v717 = vunpack.c.l.b16 %v585
    %v718 = vunpack.c.l.b16 %v586
    %v719 = vunpack.c.l.b16 %v587
    %v720 = vunpack.c.l.b16 %v588
    %v721 = vunpack.c.l.b16 %v589
    %v722 = vunpack.c.l.b16 %v590
    %v723 = vunpack.c.l.b16 %v591
    %v724 = vunpack.c.l.b16 %v592
    %v725 = vunpack.c.l.b16 %v593
    %v726 = vunpack.c.l.b16 %v594
    %v727 = vunpack.c.l.b16 %v595
    %v728 = vunpack.c.l.b16 %v596
    %v729 = vunpack.c.l.b16 %v597
    %v730 = vunpack.c.l.b16 %v598
    %v731 = vunpack.c.l.b16 %v599
    %v732 = vunpack.c.l.b16 %v600
    %v733 = vunpack.c.l.b16 %v601
    %v734 = vunpack.c.l.b16 %v602
    %v735 = vunpack.c.l.b16 %v603
    %v736 = vunpack.c.l.b16 %v604
    %v737 = vunpack.c.l.b16 %v605
    %v738 = vunpack.c.l.b16 %v606
    %v739 = vunpack.c.l.b16 %v607
    %v740 = vunpack.c.l.b16 %v608
    %v741 = vunpack.c.l.b16 %v609
    %v742 = vunpack.c.l.b16 %v610
    %v743 = vunpack.c.l.b16 %v611
    %v744 = vunpack.c.l.b16 %v612
    %v745 = vunpack.c.l.b16 %v613
    %v746 = vunpack.c.l.b16 %v614
    %v747 = vunpack.c.l.b16 %v615
    %v748 = vunpack.c.l.b16 %v616
    %v749 = vunpack.c.l.b16 %v617
    %v750 = vunpack.c.l.b16 %v618
    %v751 = vunpack.c.l.b16 %v619
    %v752 = vunpack.c.l.b16 %v620
    %v753 = vunpack.c.l.b16 %v621
    %v754 = vunpack.c.l.b16 %v622
    %v755 = vunpack.c.l.b16 %v623
    %v756 = vunpack.c.l.b16 %v624
    %v757 = vunpack.c.l.b16 %v625
    %v758 = vunpack.c.l.b16 %v626
    %v759 = vunpack.c.l.b16 %v627
    %v760 = vunpack.c.l.b16 %v628
    %v761 = vunpack.c.l.b16 %v629
    %v762 = vunpack.c.l.b16 %v630
    %v763 = vunpack.c.l.b16 %v631
    %v764 = vunpack.c.l.b16 %v632
    %v765 = vunpack.c.l.b16 %v633
    %v766 = vunpack.c.l.b16 %v634
    %v767 = vunpack.c.l.b16 %v635
    %v768 = vunpack.c.l.b16 %v636
    %v769 = vunpack.c.l.b16 %v637
    %v770 = vunpack.c.l.b16 %v638
    %v771 = vunpack.c.l.b16 %v639
    %v772 = vpack.c.b16 %v709, %v708
    %v773 = vpack.c.b16 %v711, %v710
    %v774 = vpack.c.b16 %v713, %v712
    %v775 = vpack.c.b16 %v715, %v714
    %v776 = vpack.c.b16 %v717, %v716
    %v777 = vpack.c.b16 %v719, %v718
    %v778 = vpack.c.b16 %v721, %v720
    %v779 = vpack.c.b16 %v723, %v722
    %v780 = vpack.c.b16 %v725, %v724
    %v781 = vpack.c.b16 %v727, %v726
    %v782 = vpack.c.b16 %v729, %v728
    %v783 = vpack.c.b16 %v731, %v730
    %v784 = vpack.c.b16 %v733, %v732
    %v785 = vpack.c.b16 %v735, %v734
    %v786 = vpack.c.b16 %v737, %v736
    %v787 = vpack.c.b16 %v739, %v738
    %v788 = vpack.c.b16 %v741, %v740
    %v789 = vpack.c.b16 %v743, %v742
    %v790 = vpack.c.b16 %v745, %v744
    %v791 = vpack.c.b16 %v747, %v746
    %v792 = vpack.c.b16 %v749, %v748
    %v793 = vpack.c.b16 %v751, %v750
    %v794 = vpack.c.b16 %v753, %v752
    %v795 = vpack.c.b16 %v755, %v754
    %v796 = vpack.c.b16 %v757, %v756
    %v797 = vpack.c.b16 %v759, %v758
    %v798 = vpack.c.b16 %v761, %v760
    %v799 = vpack.c.b16 %v763, %v762
    %v800 = vpack.c.b16 %v765, %v764
    %v801 = vpack.c.b16 %v767, %v766
    %v802 = vpack.c.b16 %v769, %v768
    %v803 = vpack.c.b16 %v771, %v770
    %836 = vmatpush.bf16.msra.mxu0 %v779
    %837 = vmatpush.bf16.msra.mxu0 %v778
    %838 = vmatpush.bf16.msra.mxu0 %v777
    %839 = vmatpush.bf16.msra.mxu0 %v776
    %840 = vmatpush.bf16.msra.mxu0 %v775
    %841 = vmatpush.bf16.msra.mxu0 %v774
    %842 = vmatpush.bf16.msra.mxu0 %v773
    %843 = vmatpush.bf16.msra.mxu0 %v772
    %844 = vmatmul.bf16.gmra.mxu0 %v572
    %v845 = vpop.f32.mrf.mxu0
    %v846 = vadd.f32 %v642, %v845
    %v847 = vpop.f32.mrf.mxu0
    %v848 = vadd.f32 %v642, %v847
    %849 = vdwg.mxu0
    %850 = vmatpush.bf16.msra.mxu0 %v787
    %851 = vmatpush.bf16.msra.mxu0 %v786
    %852 = vmatpush.bf16.msra.mxu0 %v785
    %853 = vmatpush.bf16.msra.mxu0 %v784
    %854 = vmatpush.bf16.msra.mxu0 %v783
    %855 = vmatpush.bf16.msra.mxu0 %v782
    %856 = vmatpush.bf16.msra.mxu0 %v781
    %857 = vmatpush.bf16.msra.mxu0 %v780
    %858 = vmatmul.bf16.gmra.mxu0 %v573
    %v859 = vpop.f32.mrf.mxu0
    %v860 = vadd.f32 %v846, %v859
    %v861 = vpop.f32.mrf.mxu0
    %v862 = vadd.f32 %v848, %v861
    %863 = vdwg.mxu0
    %864 = vmatpush.bf16.msra.mxu0 %v795
    %865 = vmatpush.bf16.msra.mxu0 %v794
    %866 = vmatpush.bf16.msra.mxu0 %v793
    %867 = vmatpush.bf16.msra.mxu0 %v792
    %868 = vmatpush.bf16.msra.mxu0 %v791
    %869 = vmatpush.bf16.msra.mxu0 %v790
    %870 = vmatpush.bf16.msra.mxu0 %v789
    %871 = vmatpush.bf16.msra.mxu0 %v788
    %872 = vmatmul.bf16.gmra.mxu0 %v574
    %v873 = vpop.f32.mrf.mxu0
    %v874 = vadd.f32 %v860, %v873
    %v875 = vpop.f32.mrf.mxu0
    %v876 = vadd.f32 %v862, %v875
    %877 = vdwg.mxu0
    %878 = vmatpush.bf16.msra.mxu0 %v803
    %879 = vmatpush.bf16.msra.mxu0 %v802
    %880 = vmatpush.bf16.msra.mxu0 %v801
    %881 = vmatpush.bf16.msra.mxu0 %v800
    %882 = vmatpush.bf16.msra.mxu0 %v799
    %883 = vmatpush.bf16.msra.mxu0 %v798
    %884 = vmatpush.bf16.msra.mxu0 %v797
    %885 = vmatpush.bf16.msra.mxu0 %v796
    %886 = vmatmul.bf16.gmra.mxu0 %v575
    %v887 = vpop.f32.mrf.mxu0
    %v888 = vadd.f32 %v874, %v887
    %v889 = vpop.f32.mrf.mxu0
    %v890 = vadd.f32 %v876, %v889
    %891 = vdwg.mxu0
    %v892 = vpack.c.bf16 %v888, %v888
    %v893 = vpack.c.bf16 %v890, %v890
    %894 = vst [vmem:[%s5] sm:$0xf] %v892
    %895 = vst [vmem:[%s5 + $0x4] sm:$0xf] %v893
    // Predicated region
    $region30: #{mlp_classifier_forward.1} parent=1 // pred_check
      _
    $region31: #{mlp_classifier_forward.1} parent=1 // pred_check_branch
      %897 = sbr.rel (0) target = $region33
    $region32: #{mlp_classifier_forward.1} parent=1 // pred_region
      _
    $region33: #{mlp_classifier_forward.1} parent=1 // pred_fallthru
      _
    // Predicated region
    $region34: #{mlp_classifier_forward.1} parent=1 // pred_check
      _
    $region35: #{mlp_classifier_forward.1} parent=1 // pred_check_branch
      %899 = sbr.rel (0) target = $region37
    $region36: #{mlp_classifier_forward.1} parent=1 // pred_region
      _
    $region37: #{mlp_classifier_forward.1} parent=1 // pred_fallthru
      _
    %900 = vsyncpa [#allocation3], 1
    %901 = vsyncpa [#allocation5], 1

</llo_original>
